<compile_context>
chip_gen: v7x
topology: tpu7x:2x2x1
jax: 0.10.0
libtpu: 0.0.40
codegen_flags: <defaults>
</compile_context>

<pallas_src>
import jax
import jax.numpy as jnp
from jax import lax
from jax.experimental import pallas as pl
from jax.experimental.pallas import tpu as pltpu


def _expand_ln_kernel(x_ref, w_ref, m_ref, g_ref, b_ref, o_ref):
    """Fused Linear(C->4C, no bias) + per-(p1,p2) LayerNorm + pixel-shuffle store.

    x_ref: (th, W, C)        f32 activations (th h-rows of W pixels each)
    w_ref: (C, D)            bf16 weight, D = dim_scale*C (transpose of torch weight)
    m_ref: (D, D)            bf16 block-diagonal averaging matrix (G blocks of 1/c)
    g_ref: (1, D)            f32 LayerNorm gamma, tiled over the G groups
    b_ref: (1, D)            f32 LayerNorm beta,  tiled over the G groups
    o_ref: (th, P, W, P*c)   output already in final layout order (P = dim_scale)
    """
    th, P, W, fc = o_ref.shape
    C = x_ref.shape[-1]
    rows = th * W

    # In-kernel bf16 cast (free VPU op), expand matmul on MXU, f32 accumulate.
    xb = x_ref[...].reshape(rows, C).astype(jnp.bfloat16)
    z = jnp.dot(xb, w_ref[...], preferred_element_type=jnp.float32)        # (rows, D)

    # Group statistics via the block-diagonal bf16 averaging matrix: keeps the
    # lane-dense (rows, D) layout, no reshape of the c axis into lanes.
    mean = jnp.dot(z.astype(jnp.bfloat16), m_ref[...],
                   preferred_element_type=jnp.float32)                      # (rows, D)
    zc = z - mean
    var = jnp.dot((zc * zc).astype(jnp.bfloat16), m_ref[...],
                  preferred_element_type=jnp.float32)                       # (rows, D)
    # rsqrt after the broadcast: EUP slot, effectively free.
    y = zc * lax.rsqrt(var + 1e-5) * g_ref[...] + b_ref[...]                # (rows, D)

    # Pixel-shuffle writeback: lane slice p1 -> output plane p1.  Row-major
    # flatten of (th, P, W, P*c) equals 'b (h p1) (w p2) c'.
    # NOTE: the per-p1 slice width P*c (= C) is ideally a multiple of 128 for
    # unmasked vst; correctness does not depend on it.
    for p1 in range(P):
        o_ref[:, p1, :, :] = (
            y[:, p1 * fc:(p1 + 1) * fc].reshape(th, W, fc).astype(o_ref.dtype))


def _vmem_budget_bytes():
    """Generation-aware VMEM budget/limit (v5e/v6e: 128 MiB, v7x: 64 MiB)."""
    try:
        cap = int(pltpu.get_tpu_info().vmem_capacity_bytes)
    except Exception:
        cap = 64 * 1024 * 1024            # conservative (v7x-safe) fallback
    limit = int(cap * 7 // 8)             # 112 MiB on v5e/v6e, 56 MiB on v7x
    budget = limit - 8 * 1024 * 1024      # headroom for compiler scratch
    return budget, limit


def _choose_hrow_tile(n_h, W, C, D, out_bytes, vmem_budget,
                      target_rows=1024, min_steps=4):
    """Pick th = h-rows per grid step.

    Counts the double-buffered input/output blocks, the resident weight / M /
    gamma / beta (conservatively counted double-buffered), and the f32
    in-kernel intermediates (z, mean, zc, var, y plus the bf16 matmul copies).
    Caps the tile near target_rows pixel rows (>=512 rows already hits ~85% of
    the HBM roofline) and leaves >= min_steps grid steps so both v7x
    TensorCores get >= 2 pipelined steps each.
    """
    fixed = 2 * (C * D * 2 + D * D * 2 + 2 * D * 4)
    per_hrow = W * (2 * (C * 4)              # input block (f32), double-buffered
                    + 2 * (D * out_bytes)    # output block, double-buffered
                    + 2 * C                  # bf16 copy of x
                    + 5 * D * 4              # f32 intermediates (z, mean, zc, var, y)
                    + 2 * D * 2)             # bf16 copies feeding the stat matmuls
    avail = max(vmem_budget - fixed, per_hrow)
    th = max(1, avail // per_hrow)
    th = min(th, max(1, target_rows // max(W, 1)), -(-n_h // min_steps))
    return max(1, int(th))


def final_patch_expand2d(x, w, gamma, beta, dim_scale=4, out_dtype=None):
    """x: (B, H, W, C); w: (C, dim_scale*C) (transpose of torch Linear.weight);
    gamma/beta: (C // dim_scale,).  Returns (B, s*H, s*W, C // dim_scale).

    Pass out_dtype=jnp.bfloat16 to halve output HBM traffic if the consumer
    tolerates it (numerics change); default keeps the input dtype.
    """
    B, H, W, C = x.shape
    assert C % dim_scale == 0
    c = C // dim_scale
    D = dim_scale * C                    # expanded lane width = dim_scale^2 * c
    fc = dim_scale * c                   # lanes per p1 plane (= C)
    n_h = B * H
    out_dtype = x.dtype if out_dtype is None else out_dtype

    x3 = x.reshape(n_h, W, C)            # free (merge leading dims only)
    w_m = w.astype(jnp.bfloat16)

    # Block-diagonal averaging matrix: G = dim_scale^2 blocks of (c x c) 1/c.
    grp = jnp.arange(D, dtype=jnp.int32) // c
    m = ((grp[:, None] == grp[None, :]).astype(jnp.float32) / float(c)
         ).astype(jnp.bfloat16)

    G = dim_scale * dim_scale
    gamma_t = jnp.tile(gamma.astype(jnp.float32), G)[None, :]    # (1, D)
    beta_t = jnp.tile(beta.astype(jnp.float32), G)[None, :]      # (1, D)

    vmem_budget, vmem_limit = _vmem_budget_bytes()
    th = _choose_hrow_tile(n_h, W, C, D, jnp.dtype(out_dtype).itemsize,
                           vmem_budget)
    grid = (pl.cdiv(n_h, th),)

    # TODO(synk): single-buffer the grid-invariant inputs (w_m, m, gamma, beta)
    # via pipeline_mode=pl.Buffered(1) once verified on the target jax build,
    # and add a K-tiled fallback for very large C where the resident (C,4C)
    # weight and (4C,4C) M no longer fit VMEM.
    y = pl.pallas_call(
        _expand_ln_kernel,
        out_shape=jax.ShapeDtypeStruct((n_h, dim_scale, W, fc), out_dtype),
        grid=grid,
        in_specs=[
            pl.BlockSpec((th, W, C), lambda i: (i, 0, 0)),        # activations
            pl.BlockSpec((C, D), lambda i: (0, 0)),               # weight (resident)
            pl.BlockSpec((D, D), lambda i: (0, 0)),               # averaging matrix
            pl.BlockSpec((1, D), lambda i: (0, 0)),               # gamma (tiled)
            pl.BlockSpec((1, D), lambda i: (0, 0)),               # beta  (tiled)
        ],
        out_specs=pl.BlockSpec((th, dim_scale, W, fc), lambda i: (i, 0, 0, 0)),
        compiler_params=pltpu.CompilerParams(
            dimension_semantics=("parallel",),
            vmem_limit_bytes=vmem_limit,
        ),
    )(x3, w_m, m, gamma_t, beta_t)

    # (B*H, p1, W, p2*c) row-major == 'b (h p1) (w p2) c': free reshape only.
    return y.reshape(B, H * dim_scale, W * dim_scale, c)


if __name__ == "__main__":
    key = jax.random.PRNGKey(0)
    B, H, W, C = 2, 8, 8, 32             # dim = C = 32
    dim_scale = 4                        # module default
    c = C // dim_scale

    kx, kw = jax.random.split(key, 2)
    x = jax.random.normal(kx, (B, H, W, C), dtype=jnp.float32)
    # nn.Linear(C, 4C, bias=False).weight is (4C, C); we store its transpose.
    w = jax.random.normal(kw, (C, dim_scale * C), dtype=jnp.float32) * 0.02
    # nn.LayerNorm(C // dim_scale) default init: weight=1, bias=0.
    gamma = jnp.ones((c,), jnp.float32)
    beta = jnp.zeros((c,), jnp.float32)

    out = final_patch_expand2d(x, w, gamma, beta, dim_scale)
    jax.block_until_ready(out)
    assert out.shape == (B, H * dim_scale, W * dim_scale, c)
    assert out.dtype == jnp.float32

    # Pure-JAX reference (same bf16 rounding of the matmul inputs, f32 LN math,
    # module op order with an explicit rearrange + transpose).
    zr = jnp.dot(x.reshape(-1, C).astype(jnp.bfloat16),
                 w.astype(jnp.bfloat16), preferred_element_type=jnp.float32)
    zr = zr.reshape(B, H, W, dim_scale, dim_scale, c)
    zr = jnp.transpose(zr, (0, 1, 3, 2, 4, 5)).reshape(
        B, H * dim_scale, W * dim_scale, c)
    mu = jnp.mean(zr, axis=-1, keepdims=True)
    var = jnp.mean((zr - mu) ** 2, axis=-1, keepdims=True)
    ref = (zr - mu) * lax.rsqrt(var + 1e-5) * gamma + beta
    assert bool(jnp.allclose(out, ref, atol=2e-2, rtol=2e-2)), \
        float(jnp.max(jnp.abs(out - ref)))

    print("KERNEL_OK")
</pallas_src>

<mosaic_0001>
module attributes {stable_mosaic.version = 11 : i64} {
  func.func @_expand_ln_kernel(%arg0: i32, %arg1: memref<4x8x32xf32, #tpu.memory_space<vmem>>, %arg2: memref<32x128xbf16, #tpu.memory_space<vmem>>, %arg3: memref<128x128xbf16, #tpu.memory_space<vmem>>, %arg4: memref<1x128xf32, #tpu.memory_space<vmem>>, %arg5: memref<1x128xf32, #tpu.memory_space<vmem>>, %arg6: memref<4x4x8x32xf32, #tpu.memory_space<vmem>>) attributes {dimension_semantics = [#tpu.dimension_semantics<parallel>], iteration_bounds = array<i64: 4>, scalar_prefetch = 0 : i64, scratch_operands = 0 : i64, tpu.core_type = #tpu.core_type<tc>, window_params = [{transform_indices = @transform_0, window_bounds = array<i64: 4, 8, 32>}, {pipeline_mode = #tpu.pipeline_mode<synchronous>, transform_indices = @transform_1, window_bounds = array<i64: 32, 128>}, {pipeline_mode = #tpu.pipeline_mode<synchronous>, transform_indices = @transform_2, window_bounds = array<i64: 128, 128>}, {pipeline_mode = #tpu.pipeline_mode<synchronous>, transform_indices = @transform_3, window_bounds = array<i64: 1, 128>}, {pipeline_mode = #tpu.pipeline_mode<synchronous>, transform_indices = @transform_4, window_bounds = array<i64: 1, 128>}, {transform_indices = @transform_5, window_bounds = array<i64: 4, 4, 8, 32>}]} {
    %c0 = arith.constant 0 : index
    %c0_0 = arith.constant 0 : index
    %c0_1 = arith.constant 0 : index
    %0 = vector.load %arg1[%c0, %c0_0, %c0_1] : memref<4x8x32xf32, #tpu.memory_space<vmem>>, vector<4x8x32xf32>
    %1 = vector.shape_cast %0 : vector<4x8x32xf32> to vector<32x32xf32>
    %2 = arith.truncf %1 : vector<32x32xf32> to vector<32x32xbf16>
    %c0_2 = arith.constant 0 : index
    %c0_3 = arith.constant 0 : index
    %3 = vector.load %arg2[%c0_2, %c0_3] : memref<32x128xbf16, #tpu.memory_space<vmem>>, vector<32x128xbf16>
    %cst = arith.constant dense<0.000000e+00> : vector<32x128xf32>
    %4 = tpu.matmul %2, %3, %cst {dimension_numbers = #tpu.dot_dimension_numbers<[1], [0], [0], [1], [0, 0, 1, 1], [], []>} : vector<32x32xbf16>, vector<32x128xbf16>, vector<32x128xf32> -> vector<32x128xf32>
    %5 = arith.truncf %4 : vector<32x128xf32> to vector<32x128xbf16>
    %c0_4 = arith.constant 0 : index
    %c0_5 = arith.constant 0 : index
    %6 = vector.load %arg3[%c0_4, %c0_5] : memref<128x128xbf16, #tpu.memory_space<vmem>>, vector<128x128xbf16>
    %cst_6 = arith.constant dense<0.000000e+00> : vector<32x128xf32>
    %7 = tpu.matmul %5, %6, %cst_6 {dimension_numbers = #tpu.dot_dimension_numbers<[1], [0], [0], [1], [0, 0, 1, 1], [], []>} : vector<32x128xbf16>, vector<128x128xbf16>, vector<32x128xf32> -> vector<32x128xf32>
    %8 = arith.subf %4, %7 : vector<32x128xf32>
    %9 = arith.mulf %8, %8 : vector<32x128xf32>
    %10 = arith.truncf %9 : vector<32x128xf32> to vector<32x128xbf16>
    %c0_7 = arith.constant 0 : index
    %c0_8 = arith.constant 0 : index
    %11 = vector.load %arg3[%c0_7, %c0_8] : memref<128x128xbf16, #tpu.memory_space<vmem>>, vector<128x128xbf16>
    %cst_9 = arith.constant dense<0.000000e+00> : vector<32x128xf32>
    %12 = tpu.matmul %10, %11, %cst_9 {dimension_numbers = #tpu.dot_dimension_numbers<[1], [0], [0], [1], [0, 0, 1, 1], [], []>} : vector<32x128xbf16>, vector<128x128xbf16>, vector<32x128xf32> -> vector<32x128xf32>
    %cst_10 = arith.constant 9.99999974E-6 : f32
    %13 = vector.broadcast %cst_10 : f32 to vector<32x128xf32>
    %14 = arith.addf %12, %13 : vector<32x128xf32>
    %15 = math.rsqrt %14 : vector<32x128xf32>
    %16 = arith.mulf %8, %15 : vector<32x128xf32>
    %c0_11 = arith.constant 0 : index
    %c0_12 = arith.constant 0 : index
    %17 = vector.load %arg4[%c0_11, %c0_12] : memref<1x128xf32, #tpu.memory_space<vmem>>, vector<1x128xf32>
    %18 = vector.broadcast %17 : vector<1x128xf32> to vector<32x128xf32>
    %19 = arith.mulf %16, %18 : vector<32x128xf32>
    %c0_13 = arith.constant 0 : index
    %c0_14 = arith.constant 0 : index
    %20 = vector.load %arg5[%c0_13, %c0_14] : memref<1x128xf32, #tpu.memory_space<vmem>>, vector<1x128xf32>
    %21 = vector.broadcast %20 : vector<1x128xf32> to vector<32x128xf32>
    %22 = arith.addf %19, %21 : vector<32x128xf32>
    %23 = vector.extract_strided_slice %22 {offsets = [0, 0], sizes = [32, 32], strides = [1, 1]} : vector<32x128xf32> to vector<32x32xf32>
    %24 = vector.shape_cast %23 : vector<32x32xf32> to vector<4x8x32xf32>
    %c0_15 = arith.constant 0 : index
    %c0_16 = arith.constant 0 : index
    %c0_17 = arith.constant 0 : index
    %c0_18 = arith.constant 0 : index
    %25 = vector.load %arg6[%c0_15, %c0_16, %c0_17, %c0_18] : memref<4x4x8x32xf32, #tpu.memory_space<vmem>>, vector<4x1x8x32xf32>
    %26 = vector.shape_cast %25 : vector<4x1x8x32xf32> to vector<4x8x32xf32>
    %27 = vector.shape_cast %24 : vector<4x8x32xf32> to vector<4x1x8x32xf32>
    tpu.vector_store %arg6[%c0_15, %c0_16, %c0_17, %c0_18], %27 {strides = array<i32>} : memref<4x4x8x32xf32, #tpu.memory_space<vmem>>, vector<4x1x8x32xf32>,
    %28 = vector.extract_strided_slice %22 {offsets = [0, 32], sizes = [32, 32], strides = [1, 1]} : vector<32x128xf32> to vector<32x32xf32>
    %29 = vector.shape_cast %28 : vector<32x32xf32> to vector<4x8x32xf32>
    %c0_19 = arith.constant 0 : index
    %c1 = arith.constant 1 : index
    %c0_20 = arith.constant 0 : index
    %c0_21 = arith.constant 0 : index
    %30 = vector.load %arg6[%c0_19, %c1, %c0_20, %c0_21] : memref<4x4x8x32xf32, #tpu.memory_space<vmem>>, vector<4x1x8x32xf32>
    %31 = vector.shape_cast %30 : vector<4x1x8x32xf32> to vector<4x8x32xf32>
    %32 = vector.shape_cast %29 : vector<4x8x32xf32> to vector<4x1x8x32xf32>
    tpu.vector_store %arg6[%c0_19, %c1, %c0_20, %c0_21], %32 {strides = array<i32>} : memref<4x4x8x32xf32, #tpu.memory_space<vmem>>, vector<4x1x8x32xf32>,
    %33 = vector.extract_strided_slice %22 {offsets = [0, 64], sizes = [32, 32], strides = [1, 1]} : vector<32x128xf32> to vector<32x32xf32>
    %34 = vector.shape_cast %33 : vector<32x32xf32> to vector<4x8x32xf32>
    %c0_22 = arith.constant 0 : index
    %c2 = arith.constant 2 : index
    %c0_23 = arith.constant 0 : index
    %c0_24 = arith.constant 0 : index
    %35 = vector.load %arg6[%c0_22, %c2, %c0_23, %c0_24] : memref<4x4x8x32xf32, #tpu.memory_space<vmem>>, vector<4x1x8x32xf32>
    %36 = vector.shape_cast %35 : vector<4x1x8x32xf32> to vector<4x8x32xf32>
    %37 = vector.shape_cast %34 : vector<4x8x32xf32> to vector<4x1x8x32xf32>
    tpu.vector_store %arg6[%c0_22, %c2, %c0_23, %c0_24], %37 {strides = array<i32>} : memref<4x4x8x32xf32, #tpu.memory_space<vmem>>, vector<4x1x8x32xf32>,
    %38 = vector.extract_strided_slice %22 {offsets = [0, 96], sizes = [32, 32], strides = [1, 1]} : vector<32x128xf32> to vector<32x32xf32>
    %39 = vector.shape_cast %38 : vector<32x32xf32> to vector<4x8x32xf32>
    %c0_25 = arith.constant 0 : index
    %c3 = arith.constant 3 : index
    %c0_26 = arith.constant 0 : index
    %c0_27 = arith.constant 0 : index
    %40 = vector.load %arg6[%c0_25, %c3, %c0_26, %c0_27] : memref<4x4x8x32xf32, #tpu.memory_space<vmem>>, vector<4x1x8x32xf32>
    %41 = vector.shape_cast %40 : vector<4x1x8x32xf32> to vector<4x8x32xf32>
    %42 = vector.shape_cast %39 : vector<4x8x32xf32> to vector<4x1x8x32xf32>
    tpu.vector_store %arg6[%c0_25, %c3, %c0_26, %c0_27], %42 {strides = array<i32>} : memref<4x4x8x32xf32, #tpu.memory_space<vmem>>, vector<4x1x8x32xf32>,
    return
  }
  func.func @transform_0(%arg0: i32) -> (i32, i32, i32) {
    %c0_i32 = arith.constant 0 : i32
    %c0_i32_0 = arith.constant 0 : i32
    %c0_i32_1 = arith.constant 0 : i32
    return %arg0, %c0_i32, %c0_i32_0 : i32, i32, i32
  }
  func.func @transform_1(%arg0: i32) -> (i32, i32) {
    %c0_i32 = arith.constant 0 : i32
    %c0_i32_0 = arith.constant 0 : i32
    %c0_i32_1 = arith.constant 0 : i32
    return %c0_i32, %c0_i32_0 : i32, i32
  }
  func.func @transform_2(%arg0: i32) -> (i32, i32) {
    %c0_i32 = arith.constant 0 : i32
    %c0_i32_0 = arith.constant 0 : i32
    %c0_i32_1 = arith.constant 0 : i32
    return %c0_i32, %c0_i32_0 : i32, i32
  }
  func.func @transform_3(%arg0: i32) -> (i32, i32) {
    %c0_i32 = arith.constant 0 : i32
    %c0_i32_0 = arith.constant 0 : i32
    %c0_i32_1 = arith.constant 0 : i32
    return %c0_i32, %c0_i32_0 : i32, i32
  }
  func.func @transform_4(%arg0: i32) -> (i32, i32) {
    %c0_i32 = arith.constant 0 : i32
    %c0_i32_0 = arith.constant 0 : i32
    %c0_i32_1 = arith.constant 0 : i32
    return %c0_i32, %c0_i32_0 : i32, i32
  }
  func.func @transform_5(%arg0: i32) -> (i32, i32, i32, i32) {
    %c0_i32 = arith.constant 0 : i32
    %c0_i32_0 = arith.constant 0 : i32
    %c0_i32_1 = arith.constant 0 : i32
    %c0_i32_2 = arith.constant 0 : i32
    return %arg0, %c0_i32, %c0_i32_0, %c0_i32_1 : i32, i32, i32, i32
  }
}

</mosaic_0001>

<llo_original>
// kernel: tpu_custom_call.1
$region0: #{tpu_custom_call.1}
  #allocation0 [shape = 'u32[]', space=smem, size = 0x4, offset = 0x4, fixed_abs, tag = 'smem constant byte address 0x4 - core index']
  #allocation1 [shape = 'u32[144,128]{1,0:T(1,128)}', space=vmem, size = 0x12000, scoped, tag = 'internal scratch']
  %s0 = inlined_call_operand.hbm [shape: f32[16,8,32], index: 0, kind: input, shape index: {}]
  %s1 = inlined_call_operand.hbm [shape: bf16[32,128], index: 1, kind: input, shape index: {}]
  %s2 = inlined_call_operand.hbm [shape: bf16[128,128], index: 2, kind: input, shape index: {}]
  %s3 = inlined_call_operand.vmem [shape: f32[1,128], index: 3, kind: input, shape index: {}]
  %s4 = inlined_call_operand.vmem [shape: f32[1,128], index: 4, kind: input, shape index: {}]
  %s5 = inlined_call_operand.hbm [shape: f32[16,4,8,32], index: 5, kind: output, shape index: {}]
  %s6 = sld [smem:[#allocation0]]
  $region65: #{tpu_custom_call.1} parent=0
    _
  %s8 = ssub.s32 1, %s6
  %s9 = scalar_select 0, %s8, %s6
  $region1: #{tpu_custom_call.1} parent=0
    #allocation2 [shape = 'u8[32768]{0}', space=vmem, size = 0x8000, scoped, tag = 'input window, operand 0']
    #allocation3 [shape = 's32[2]{0}', space=sflag, size = 0x8, scoped, tag = 'scoped memory for tpu_custom_call.1']
    #allocation4 [shape = 's32[2]{0}', space=sflag, size = 0x8, scoped, tag = 'scoped memory for tpu_custom_call.1']
    #allocation5 [shape = 'u8[8192]{0}', space=vmem, size = 0x2000, scoped, tag = 'input window, operand 1, single buffered']
    #allocation6 [shape = 's32[1]{0}', space=sflag, size = 0x4, scoped, tag = 'scoped memory for tpu_custom_call.1']
    #allocation7 [shape = 'u8[32768]{0}', space=vmem, size = 0x8000, scoped, tag = 'input window, operand 2, single buffered']
    #allocation8 [shape = 'u8[131072]{0}', space=vmem, size = 0x20000, scoped, tag = 'output window, operand 0']
    %10 = vsyncpa [#allocation3], 0
    %s11 = scalar_lea.sflag [#allocation3], 1
    %12 = vsyncpa %s11, 0
    %13 = vsyncpa [#allocation6], 0
    %14 = vsyncpa [#allocation4], 0
    %s15 = scalar_lea.sflag [#allocation4], 1
    %16 = vsyncpa %s15, 0
    loop: start=0, step=1, limit=6
    $region2: #{tpu_custom_call.1} parent=1 // loop_pre_header
      _
    $region3: #{tpu_custom_call.1} parent=1 // loop_header
      %s18 = sphi 0, %s22
      %p19 = scmp.ge.s32.totalorder %s18, 6
      %s28 = sphi 0, %s30
      %s31 = sphi 0, %s28
      %s32 = sphi 0, %s31
      %s48 = sphi 0, %s32
      %s52 = sphi 0, %s52
      %s54 = sphi 0, %s52
      %s55 = sphi 0, %s54
      %s69 = sphi 0, %s55
      %s73 = sphi 0, %s73
      %s75 = sphi 0, %s73
      %s76 = sphi 0, %s75
      %s90 = sphi 0, %s76
      %s94 = sphi 0, %s94
      %s96 = sphi 0, %s94
      %s97 = sphi 0, %s96
      %s111 = sphi 0, %s97
      %s115 = sphi 0, %s115
      %s117 = sphi 0, %s115
      %s118 = sphi 0, %s117
      %s132 = sphi 0, %s118
      %s138 = sphi 0, %s140
      %s141 = sphi 0, %s138
      %s142 = sphi 0, %s141
      %s158 = sphi 0, %s142
    $region4: #{tpu_custom_call.1} parent=1 // loop_header_branch
      %21 = sbr.rel (%p19) target = $region8
    $region5: #{tpu_custom_call.1} parent=1 // loop_body
      %s23 = ssub.s32 %s18, 1
      %s24 = ssub.s32 %s18, 2
      %s25 = sadd.s32 %s18, 1
      %s26 = ssub.s32 %s18, %s25
      %p27 = scmp.eq.s32.totalorder %s26, 0
      %s29 = sadd.s32 %s28, 1
      %s30 = scalar_select %p27, %s28, %s29
      %p33 = pneg %p27
      %p34 = scmp.eq.s32.totalorder %s18, 3
      %p35 = por %p33, %p34
      %p36 = scmp.ne.s32.totalorder %s28, %s31
      %p37 = scmp.eq.s32.totalorder %s18, 0
      %p38 = por %p36, %p37
      %p39 = scmp.ne.s32.totalorder %s28, %s31
      %p40 = scmp.eq.s32.totalorder %s23, 3
      %p41 = por %p39, %p40
      %p42 = scmp.ne.s32.totalorder %s31, %s32
      %p43 = scmp.eq.s32.totalorder %s23, 0
      %p44 = por %p42, %p43
      %p45 = scmp.ne.s32.totalorder %s31, %s32
      %p46 = scmp.eq.s32.totalorder %s24, 3
      %p47 = por %p45, %p46
      %p49 = scmp.ne.s32.totalorder %s32, %s48
      %p50 = scmp.eq.s32.totalorder %s24, 0
      %p51 = por %p49, %p50
      %s53 = sadd.s32 %s52, 1
      %p56 = scmp.eq.s32.totalorder %s18, 3
      %p57 = scmp.ne.s32.totalorder %s52, %s54
      %p58 = scmp.eq.s32.totalorder %s18, 0
      %p59 = por %p57, %p58
      %p60 = scmp.ne.s32.totalorder %s52, %s54
      %p61 = scmp.eq.s32.totalorder %s23, 3
      %p62 = por %p60, %p61
      %p63 = scmp.ne.s32.totalorder %s54, %s55
      %p64 = scmp.eq.s32.totalorder %s23, 0
      %p65 = por %p63, %p64
      %p66 = scmp.ne.s32.totalorder %s54, %s55
      %p67 = scmp.eq.s32.totalorder %s24, 3
      %p68 = por %p66, %p67
      %p70 = scmp.ne.s32.totalorder %s55, %s69
      %p71 = scmp.eq.s32.totalorder %s24, 0
      %p72 = por %p70, %p71
      %s74 = sadd.s32 %s73, 1
      %p77 = scmp.eq.s32.totalorder %s18, 3
      %p78 = scmp.ne.s32.totalorder %s73, %s75
      %p79 = scmp.eq.s32.totalorder %s18, 0
      %p80 = por %p78, %p79
      %p81 = scmp.ne.s32.totalorder %s73, %s75
      %p82 = scmp.eq.s32.totalorder %s23, 3
      %p83 = por %p81, %p82
      %p84 = scmp.ne.s32.totalorder %s75, %s76
      %p85 = scmp.eq.s32.totalorder %s23, 0
      %p86 = por %p84, %p85
      %p87 = scmp.ne.s32.totalorder %s75, %s76
      %p88 = scmp.eq.s32.totalorder %s24, 3
      %p89 = por %p87, %p88
      %p91 = scmp.ne.s32.totalorder %s76, %s90
      %p92 = scmp.eq.s32.totalorder %s24, 0
      %p93 = por %p91, %p92
      %s95 = sadd.s32 %s94, 1
      %p98 = scmp.eq.s32.totalorder %s18, 3
      %p99 = scmp.ne.s32.totalorder %s94, %s96
      %p100 = scmp.eq.s32.totalorder %s18, 0
      %p101 = por %p99, %p100
      %p102 = scmp.ne.s32.totalorder %s94, %s96
      %p103 = scmp.eq.s32.totalorder %s23, 3
      %p104 = por %p102, %p103
      %p105 = scmp.ne.s32.totalorder %s96, %s97
      %p106 = scmp.eq.s32.totalorder %s23, 0
      %p107 = por %p105, %p106
      %p108 = scmp.ne.s32.totalorder %s96, %s97
      %p109 = scmp.eq.s32.totalorder %s24, 3
      %p110 = por %p108, %p109
      %p112 = scmp.ne.s32.totalorder %s97, %s111
      %p113 = scmp.eq.s32.totalorder %s24, 0
      %p114 = por %p112, %p113
      %s116 = sadd.s32 %s115, 1
      %p119 = scmp.eq.s32.totalorder %s18, 3
      %p120 = scmp.ne.s32.totalorder %s115, %s117
      %p121 = scmp.eq.s32.totalorder %s18, 0
      %p122 = por %p120, %p121
      %p123 = scmp.ne.s32.totalorder %s115, %s117
      %p124 = scmp.eq.s32.totalorder %s23, 3
      %p125 = por %p123, %p124
      %p126 = scmp.ne.s32.totalorder %s117, %s118
      %p127 = scmp.eq.s32.totalorder %s23, 0
      %p128 = por %p126, %p127
      %p129 = scmp.ne.s32.totalorder %s117, %s118
      %p130 = scmp.eq.s32.totalorder %s24, 3
      %p131 = por %p129, %p130
      %p133 = scmp.ne.s32.totalorder %s118, %s132
      %p134 = scmp.eq.s32.totalorder %s24, 0
      %p135 = por %p133, %p134
      %s136 = ssub.s32 %s18, %s25
      %p137 = scmp.eq.s32.totalorder %s136, 0
      %s139 = sadd.s32 %s138, 1
      %s140 = scalar_select %p137, %s138, %s139
      %p143 = pneg %p137
      %p144 = scmp.eq.s32.totalorder %s18, 3
      %p145 = por %p143, %p144
      %p146 = scmp.ne.s32.totalorder %s138, %s141
      %p147 = scmp.eq.s32.totalorder %s18, 0
      %p148 = por %p146, %p147
      %p149 = scmp.ne.s32.totalorder %s138, %s141
      %p150 = scmp.eq.s32.totalorder %s23, 3
      %p151 = por %p149, %p150
      %p152 = scmp.ne.s32.totalorder %s141, %s142
      %p153 = scmp.eq.s32.totalorder %s23, 0
      %p154 = por %p152, %p153
      %p155 = scmp.ne.s32.totalorder %s141, %s142
      %p156 = scmp.eq.s32.totalorder %s24, 3
      %p157 = por %p155, %p156
      %p159 = scmp.ne.s32.totalorder %s142, %s158
      %p160 = scmp.eq.s32.totalorder %s24, 0
      %p161 = por %p159, %p160
      %p162 = scmp.le.s32.totalorder 1, %s18
      %p163 = scmp.lt.s32.totalorder %s18, 5
      %p164 = pnand %p162, %p163
      %p165 = pneg %p164
      // Predicated region
      $region9: #{tpu_custom_call.1} parent=5 // pred_check
        _
      $region10: #{tpu_custom_call.1} parent=5 // pred_check_branch
        %167 = sbr.rel (%p164) target = $region12
      $region11: #{tpu_custom_call.1} parent=5 // pred_region
        %s168 = ssub.s32 %s18, 1
        // Predicated region
        $region13: #{tpu_custom_call.1} parent=11 // pred_check
          %p169 = pneg %p65
        $region14: #{tpu_custom_call.1} parent=11 // pred_check_branch
          %171 = sbr.rel (%p169) target = $region16
        $region15: #{tpu_custom_call.1} parent=11 // pred_region
          %s173 = ssub.s32 256, 256
          %174 = vsyncadd [#allocation6], %s173
          %s175 = sshll.u32 [#allocation5], 4
          %s176 = int_to_ptr.vmem [resolvable:$true] %s175
          %181 = dma.hbm_to_vmem [thread:$0]  %s1, 256, %s176, [#allocation6], 64, 64, 4
        $region16: #{tpu_custom_call.1} parent=11 // pred_fallthru
          _
        // Predicated region
        $region17: #{tpu_custom_call.1} parent=11 // pred_check
          %p182 = pneg %p86
        $region18: #{tpu_custom_call.1} parent=11 // pred_check_branch
          %184 = sbr.rel (%p182) target = $region20
        $region19: #{tpu_custom_call.1} parent=11 // pred_region
          %s186 = ssub.s32 1024, 1024
          %187 = vsyncadd [#allocation6], %s186
          %s188 = sshll.u32 [#allocation7], 4
          %s189 = int_to_ptr.vmem [resolvable:$true] %s188
          %194 = dma.hbm_to_vmem [thread:$0]  %s2, 1024, %s189, [#allocation6], 64, 64, 4
        $region20: #{tpu_custom_call.1} parent=11 // pred_fallthru
          _
        // Predicated region
        $region21: #{tpu_custom_call.1} parent=11 // pred_check
          %p195 = pneg %p107
        $region22: #{tpu_custom_call.1} parent=11 // pred_check_branch
          %197 = sbr.rel (%p195) target = $region24
        $region23: #{tpu_custom_call.1} parent=11 // pred_region
          _
        $region24: #{tpu_custom_call.1} parent=11 // pred_fallthru
          _
        // Predicated region
        $region25: #{tpu_custom_call.1} parent=11 // pred_check
          %p198 = pneg %p128
        $region26: #{tpu_custom_call.1} parent=11 // pred_check_branch
          %200 = sbr.rel (%p198) target = $region28
        $region27: #{tpu_custom_call.1} parent=11 // pred_region
          _
        $region28: #{tpu_custom_call.1} parent=11 // pred_fallthru
          _
      $region12: #{tpu_custom_call.1} parent=5 // pred_fallthru
        _
      %p201 = scmp.lt.s32.totalorder %s18, 4
      // Predicated region
      $region29: #{tpu_custom_call.1} parent=5 // pred_check
        %p202 = pneg %p201
      $region30: #{tpu_custom_call.1} parent=5 // pred_check_branch
        %204 = sbr.rel (%p202) target = $region32
      $region31: #{tpu_custom_call.1} parent=5 // pred_region
        // Predicated region
        $region33: #{tpu_custom_call.1} parent=31 // pred_check
          %p205 = pneg %p38
        $region34: #{tpu_custom_call.1} parent=31 // pred_check_branch
          %207 = sbr.rel (%p205) target = $region36
        $region35: #{tpu_custom_call.1} parent=31 // pred_region
          %s208 = sand.u32 %s28, 1
          %s209 = scalar_lea.sflag [#allocation3], %s208
          %s210 = sand.u32 %s28, 1
          %s211 = smul.addr %s210, 32
          %s212 = scalar_lea.vmem [#allocation2], %s211
          %s213 = smul.u32 4, %s18
          %s215 = ssub.s32 512, 512
          %216 = vsyncadd %s209, %s215
          %s217 = smul.addr %s213, 128
          %s218 = scalar_lea.hbm %s0, %s217
          %s219 = sshll.u32 %s212, 4
          %s220 = int_to_ptr.vmem [resolvable:$true] %s219
          %225 = dma.hbm_to_vmem [thread:$0]  %s218, 512, %s220, %s209, 128, 128, 8
        $region36: #{tpu_custom_call.1} parent=31 // pred_fallthru
          _
      $region32: #{tpu_custom_call.1} parent=5 // pred_fallthru
        _
      %p226 = scmp.le.s32.totalorder 1, %s18
      %p227 = scmp.lt.s32.totalorder %s18, 5
      %p228 = pnand %p226, %p227
      %p229 = pneg %p228
      // Predicated region
      $region37: #{tpu_custom_call.1} parent=5 // pred_check
        _
      $region38: #{tpu_custom_call.1} parent=5 // pred_check_branch
        %231 = sbr.rel (%p228) target = $region40
      $region39: #{tpu_custom_call.1} parent=5 // pred_region
        %s232 = ssub.s32 %s18, 1
        %s233 = sand.u32 %s31, 1
        %s234 = scalar_lea.sflag [#allocation3], %s233
        %s235 = sand.u32 %s31, 1
        %s236 = smul.addr %s235, 32
        %s237 = scalar_lea.vmem [#allocation2], %s236
        // Predicated region
        $region41: #{tpu_custom_call.1} parent=39 // pred_check
          %p238 = pneg %p44
        $region42: #{tpu_custom_call.1} parent=39 // pred_check_branch
          %240 = sbr.rel (%p238) target = $region44
        $region43: #{tpu_custom_call.1} parent=39 // pred_region
          %241 = dma.done %s234, 512
        $region44: #{tpu_custom_call.1} parent=39 // pred_fallthru
          _
        // Predicated region
        $region45: #{tpu_custom_call.1} parent=39 // pred_check
          %p242 = pneg %p65
        $region46: #{tpu_custom_call.1} parent=39 // pred_check_branch
          %244 = sbr.rel (%p242) target = $region48
        $region47: #{tpu_custom_call.1} parent=39 // pred_region
          %245 = dma.done [#allocation6], 256
        $region48: #{tpu_custom_call.1} parent=39 // pred_fallthru
          _
        // Predicated region
        $region49: #{tpu_custom_call.1} parent=39 // pred_check
          %p246 = pneg %p86
        $region50: #{tpu_custom_call.1} parent=39 // pred_check_branch
          %248 = sbr.rel (%p246) target = $region52
        $region51: #{tpu_custom_call.1} parent=39 // pred_region
          %249 = dma.done [#allocation6], 1024
        $region52: #{tpu_custom_call.1} parent=39 // pred_fallthru
          _
        %s250 = sand.u32 %s31, 1
        %s251 = scalar_lea.sflag [#allocation3], %s250
        %s252 = sand.u32 %s31, 1
        %s253 = smul.addr %s252, 32
        %s254 = scalar_lea.vmem [#allocation2], %s253
        %p255 = pneg %p44
        %p256 = pneg %p41
        %p257 = pneg %p65
        %p258 = pneg %p62
        %p259 = pneg %p86
        %p260 = pneg %p83
        %p261 = pneg %p107
        %p262 = pneg %p104
        %p263 = pneg %p128
        %p264 = pneg %p125
        %p265 = pneg %p154
        %p266 = pneg %p151
        %s267 = sand.u32 %s141, 1
        %s268 = scalar_lea.sflag [#allocation4], %s267
        %s269 = sand.u32 %s141, 1
        %s270 = smul.addr %s269, 128
        %s271 = scalar_lea.vmem [#allocation8], %s270
        %s272 = smul.u32 4, %s23
        %s273 = smul.u32 4, %s23
        %v275 = vld [vmem:[%s237] sm:$0xff]
        %v276 = vld [vmem:[%s237 + $0x8] sm:$0xff]
        %v277 = vld [vmem:[%s237 + $0x10] sm:$0xff]
        %v278 = vld [vmem:[%s237 + $0x18] sm:$0xff]
        %v279 = vpack.c.bf16 %v276, %v275
        %v280 = vpack.c.bf16 %v278, %v277
        %v281 = vld [vmem:[#allocation5] sm:$0xf]
        %v282 = vld [vmem:[#allocation5 + $0x4] sm:$0xf]
        %v283 = vld [vmem:[#allocation5 + $0x8] sm:$0xf]
        %v284 = vld [vmem:[#allocation5 + $0xc] sm:$0xf]
        %v289 = vunpack.c.l.b16 %v281
        %v290 = vunpack.c.l.b16 %v282
        %v291 = vunpack.c.l.b16 %v283
        %v292 = vunpack.c.l.b16 %v284
        %v293 = vpack.c.b16 %v290, %v289
        %v294 = vpack.c.b16 %v292, %v291
        %vm297 = vcmask 261120
        %v299 = vsel %vm297, %v279, 0
        %v302 = vsel %vm297, %v280, 0
        %304 = vmatprep.subr.bf16.mxu0 0
        %305 = vmatpush1.bf16.msra.mxu0 %v293
        %306 = vmatprep.subr.bf16.mxu0 0
        %307 = vmatpush1.bf16.msra.mxu0 %v294
        %308 = vmatprep.subr.bf16.mxu0 0
        %309 = vmatpush1.bf16.msra.mxu0 0
        %310 = vmatprep.subr.bf16.mxu0 0
        %311 = vmatpush1.bf16.msra.mxu0 0
        %312 = vmatprep.subr.bf16.mxu0 0
        %313 = vmatpush1.bf16.msra.mxu0 0
        %314 = vmatprep.subr.bf16.mxu0 0
        %315 = vmatpush1.bf16.msra.mxu0 0
        %316 = vmatprep.subr.bf16.mxu0 0
        %317 = vmatpush1.bf16.msra.mxu0 0
        %318 = vmatprep.subr.bf16.mxu0 0
        %319 = vmatpush1.bf16.msra.mxu0 0
        %320 = vmatprep.subr.bf16.mxu0 0
        %321 = vmatpush1.bf16.msra.mxu0 0
        %322 = vmatprep.subr.bf16.mxu0 0
        %323 = vmatpush1.bf16.msra.mxu0 0
        %324 = vmatprep.subr.bf16.mxu0 0
        %325 = vmatpush1.bf16.msra.mxu0 0
        %326 = vmatprep.subr.bf16.mxu0 0
        %327 = vmatpush1.bf16.msra.mxu0 0
        %328 = vmatprep.subr.bf16.mxu0 0
        %329 = vmatpush1.bf16.msra.mxu0 0
        %330 = vmatprep.subr.bf16.mxu0 0
        %331 = vmatpush1.bf16.msra.mxu0 0
        %332 = vmatprep.subr.bf16.mxu0 0
        %333 = vmatpush1.bf16.msra.mxu0 0
        %334 = vmatprep.subr.bf16.mxu0 0
        %335 = vmatpush1.bf16.msra.mxu0 0
        %336 = vmatprep.mubr.bf16.mxu0 0
        %337 = vmatmul.mubr.bf16.gmra.mrb[0].mxu0 %v299
        %v338 = vpop.f32.mrb[0].mxu0
        %v339 = vadd.f32 0.0, %v338
        %v340 = vpop.f32.mrb[0].mxu0
        %v341 = vpop.f32.mrb[0].mxu0
        %v342 = vadd.f32 0.0, %v341
        %v343 = vpop.f32.mrb[0].mxu0
        %344 = vmatprep.mubr.bf16.mxu0 0
        %345 = vmatmul.mubr.bf16.gmra.mrb[0].mxu0 %v302
        %v346 = vpop.f32.mrb[0].mxu0
        %v347 = vadd.f32 0.0, %v346
        %v348 = vpop.f32.mrb[0].mxu0
        %v349 = vpop.f32.mrb[0].mxu0
        %v350 = vadd.f32 0.0, %v349
        %v351 = vpop.f32.mrb[0].mxu0
        %352 = vdwg.mxu0
        %v353 = vpack.c.bf16 %v342, %v339
        %v354 = vpack.c.bf16 %v350, %v347
        %v355 = vld [vmem:[#allocation7] sm:$0xf]
        %v356 = vld [vmem:[#allocation7 + $0x4] sm:$0xf]
        %v357 = vld [vmem:[#allocation7 + $0x8] sm:$0xf]
        %v358 = vld [vmem:[#allocation7 + $0xc] sm:$0xf]
        %v359 = vld [vmem:[#allocation7 + $0x10] sm:$0xf]
        %v360 = vld [vmem:[#allocation7 + $0x14] sm:$0xf]
        %v361 = vld [vmem:[#allocation7 + $0x18] sm:$0xf]
        %v362 = vld [vmem:[#allocation7 + $0x1c] sm:$0xf]
        %v363 = vld [vmem:[#allocation7 + $0x20] sm:$0xf]
        %v364 = vld [vmem:[#allocation7 + $0x24] sm:$0xf]
        %v365 = vld [vmem:[#allocation7 + $0x28] sm:$0xf]
        %v366 = vld [vmem:[#allocation7 + $0x2c] sm:$0xf]
        %v367 = vld [vmem:[#allocation7 + $0x30] sm:$0xf]
        %v368 = vld [vmem:[#allocation7 + $0x34] sm:$0xf]
        %v369 = vld [vmem:[#allocation7 + $0x38] sm:$0xf]
        %v370 = vld [vmem:[#allocation7 + $0x3c] sm:$0xf]
        %v387 = vunpack.c.l.b16 %v355
        %v388 = vunpack.c.l.b16 %v356
        %v389 = vunpack.c.l.b16 %v357
        %v390 = vunpack.c.l.b16 %v358
        %v391 = vunpack.c.l.b16 %v359
        %v392 = vunpack.c.l.b16 %v360
        %v393 = vunpack.c.l.b16 %v361
        %v394 = vunpack.c.l.b16 %v362
        %v395 = vunpack.c.l.b16 %v363
        %v396 = vunpack.c.l.b16 %v364
        %v397 = vunpack.c.l.b16 %v365
        %v398 = vunpack.c.l.b16 %v366
        %v399 = vunpack.c.l.b16 %v367
        %v400 = vunpack.c.l.b16 %v368
        %v401 = vunpack.c.l.b16 %v369
        %v402 = vunpack.c.l.b16 %v370
        %v403 = vpack.c.b16 %v388, %v387
        %v404 = vpack.c.b16 %v390, %v389
        %v405 = vpack.c.b16 %v392, %v391
        %v406 = vpack.c.b16 %v394, %v393
        %v407 = vpack.c.b16 %v396, %v395
        %v408 = vpack.c.b16 %v398, %v397
        %v409 = vpack.c.b16 %v400, %v399
        %v410 = vpack.c.b16 %v402, %v401
        %419 = vmatprep.subr.bf16.mxu0 0
        %420 = vmatpush1.bf16.msra.mxu0 %v403
        %421 = vmatprep.subr.bf16.mxu0 0
        %422 = vmatpush1.bf16.msra.mxu0 %v404
        %423 = vmatprep.subr.bf16.mxu0 0
        %424 = vmatpush1.bf16.msra.mxu0 %v405
        %425 = vmatprep.subr.bf16.mxu0 0
        %426 = vmatpush1.bf16.msra.mxu0 %v406
        %427 = vmatprep.subr.bf16.mxu0 0
        %428 = vmatpush1.bf16.msra.mxu0 %v407
        %429 = vmatprep.subr.bf16.mxu0 0
        %430 = vmatpush1.bf16.msra.mxu0 %v408
        %431 = vmatprep.subr.bf16.mxu0 0
        %432 = vmatpush1.bf16.msra.mxu0 %v409
        %433 = vmatprep.subr.bf16.mxu0 0
        %434 = vmatpush1.bf16.msra.mxu0 %v410
        %435 = vmatprep.subr.bf16.mxu0 0
        %436 = vmatpush1.bf16.msra.mxu0 0
        %437 = vmatprep.subr.bf16.mxu0 0
        %438 = vmatpush1.bf16.msra.mxu0 0
        %439 = vmatprep.subr.bf16.mxu0 0
        %440 = vmatpush1.bf16.msra.mxu0 0
        %441 = vmatprep.subr.bf16.mxu0 0
        %442 = vmatpush1.bf16.msra.mxu0 0
        %443 = vmatprep.subr.bf16.mxu0 0
        %444 = vmatpush1.bf16.msra.mxu0 0
        %445 = vmatprep.subr.bf16.mxu0 0
        %446 = vmatpush1.bf16.msra.mxu0 0
        %447 = vmatprep.subr.bf16.mxu0 0
        %448 = vmatpush1.bf16.msra.mxu0 0
        %449 = vmatprep.subr.bf16.mxu0 0
        %450 = vmatpush1.bf16.msra.mxu0 0
        %451 = vmatprep.mubr.bf16.mxu0 0
        %452 = vmatmul.mubr.bf16.gmra.mrb[0].mxu0 %v353
        %v453 = vpop.f32.mrb[0].mxu0
        %v454 = vadd.f32 0.0, %v453
        %v455 = vpop.f32.mrb[0].mxu0
        %v456 = vpop.f32.mrb[0].mxu0
        %v457 = vadd.f32 0.0, %v456
        %v458 = vpop.f32.mrb[0].mxu0
        %459 = vmatprep.mubr.bf16.mxu0 0
        %460 = vmatmul.mubr.bf16.gmra.mrb[0].mxu0 %v354
        %v461 = vpop.f32.mrb[0].mxu0
        %v462 = vadd.f32 0.0, %v461
        %v463 = vpop.f32.mrb[0].mxu0
        %v464 = vpop.f32.mrb[0].mxu0
        %v465 = vadd.f32 0.0, %v464
        %v466 = vpop.f32.mrb[0].mxu0
        %467 = vdwg.mxu0
        %v468 = vsub.f32 %v339, %v454
        %v469 = vsub.f32 %v342, %v457
        %v470 = vsub.f32 %v347, %v462
        %v471 = vsub.f32 %v350, %v465
        %v472 = vmul.f32 %v468, %v468
        %v473 = vmul.f32 %v469, %v469
        %v474 = vmul.f32 %v470, %v470
        %v475 = vmul.f32 %v471, %v471
        %v476 = vpack.c.bf16 %v473, %v472
        %v477 = vpack.c.bf16 %v475, %v474
        %478 = vmatprep.subr.bf16.mxu0 0
        %479 = vmatpush1.bf16.msra.mxu0 %v403
        %480 = vmatprep.subr.bf16.mxu0 0
        %481 = vmatpush1.bf16.msra.mxu0 %v404
        %482 = vmatprep.subr.bf16.mxu0 0
        %483 = vmatpush1.bf16.msra.mxu0 %v405
        %484 = vmatprep.subr.bf16.mxu0 0
        %485 = vmatpush1.bf16.msra.mxu0 %v406
        %486 = vmatprep.subr.bf16.mxu0 0
        %487 = vmatpush1.bf16.msra.mxu0 %v407
        %488 = vmatprep.subr.bf16.mxu0 0
        %489 = vmatpush1.bf16.msra.mxu0 %v408
        %490 = vmatprep.subr.bf16.mxu0 0
        %491 = vmatpush1.bf16.msra.mxu0 %v409
        %492 = vmatprep.subr.bf16.mxu0 0
        %493 = vmatpush1.bf16.msra.mxu0 %v410
        %494 = vmatprep.subr.bf16.mxu0 0
        %495 = vmatpush1.bf16.msra.mxu0 0
        %496 = vmatprep.subr.bf16.mxu0 0
        %497 = vmatpush1.bf16.msra.mxu0 0
        %498 = vmatprep.subr.bf16.mxu0 0
        %499 = vmatpush1.bf16.msra.mxu0 0
        %500 = vmatprep.subr.bf16.mxu0 0
        %501 = vmatpush1.bf16.msra.mxu0 0
        %502 = vmatprep.subr.bf16.mxu0 0
        %503 = vmatpush1.bf16.msra.mxu0 0
        %504 = vmatprep.subr.bf16.mxu0 0
        %505 = vmatpush1.bf16.msra.mxu0 0
        %506 = vmatprep.subr.bf16.mxu0 0
        %507 = vmatpush1.bf16.msra.mxu0 0
        %508 = vmatprep.subr.bf16.mxu0 0
        %509 = vmatpush1.bf16.msra.mxu0 0
        %510 = vmatprep.mubr.bf16.mxu0 0
        %511 = vmatmul.mubr.bf16.gmra.mrb[0].mxu0 %v476
        %v512 = vpop.f32.mrb[0].mxu0
        %v513 = vadd.f32 1e-05, %v512
        %v514 = vpop.f32.mrb[0].mxu0
        %v515 = vpop.f32.mrb[0].mxu0
        %v516 = vadd.f32 1e-05, %v515
        %v517 = vpop.f32.mrb[0].mxu0
        %518 = vmatprep.mubr.bf16.mxu0 0
        %519 = vmatmul.mubr.bf16.gmra.mrb[0].mxu0 %v477
        %v520 = vpop.f32.mrb[0].mxu0
        %v521 = vadd.f32 1e-05, %v520
        %v522 = vpop.f32.mrb[0].mxu0
        %v523 = vpop.f32.mrb[0].mxu0
        %v524 = vadd.f32 1e-05, %v523
        %v525 = vpop.f32.mrb[0].mxu0
        %526 = vdwg.mxu0
        %v527 = vrsqrt.pop %v513
        %v528 = vrsqrt.pop %v516
        %v529 = vrsqrt.pop %v521
        %v530 = vrsqrt.pop %v524
        %v531 = vmul.f32 %v468, %v527
        %v532 = vmul.f32 %v469, %v528
        %v533 = vmul.f32 %v470, %v529
        %v534 = vmul.f32 %v471, %v530
        %v535 = vld [vmem:[%s3] sm:$0x1]
        %v537 = vlaneseq
        %v538 = vshrl.u32 %v537, 7
        %v539 = vsub.s32 0, %v538
        %v540 = vrot.slane %v535, %v539
        %v542 = vmul.f32 %v531, %v540
        %v543 = vmul.f32 %v532, %v540
        %v544 = vmul.f32 %v533, %v540
        %v545 = vmul.f32 %v534, %v540
        %v546 = vld [vmem:[%s4] sm:$0x1]
        %v548 = vlaneseq
        %v549 = vshrl.u32 %v548, 7
        %v550 = vsub.s32 0, %v549
        %v551 = vrot.slane %v546, %v550
        %v553 = vadd.f32 %v542, %v551
        %v554 = vadd.f32 %v543, %v551
        %v555 = vadd.f32 %v544, %v551
        %v556 = vadd.f32 %v545, %v551
        %557 = vst.msk [vmem:[%s271] sm:$0xff] %vm297, %v553
        %558 = vst.msk [vmem:[%s271 + $0x20] sm:$0xff] %vm297, %v554
        %559 = vst.msk [vmem:[%s271 + $0x40] sm:$0xff] %vm297, %v555
        %560 = vst.msk [vmem:[%s271 + $0x60] sm:$0xff] %vm297, %v556
        %565 = vrot.lane.b32.xlu0 %v553, 96
        %v566 = vpop.permute.xlu0 %565
        %567 = vrot.lane.b32.xlu0 %v554, 96
        %v568 = vpop.permute.xlu0 %567
        %569 = vrot.lane.b32.xlu0 %v555, 96
        %v570 = vpop.permute.xlu0 %569
        %571 = vrot.lane.b32.xlu0 %v556, 96
        %v572 = vpop.permute.xlu0 %571
        %s577 = scalar_lea.vmem %s271, 8 [#allocation8]
        %578 = vst.msk [vmem:[%s577] sm:$0xff] %vm297, %v566
        %579 = vst.msk [vmem:[%s577 + $0x20] sm:$0xff] %vm297, %v568
        %580 = vst.msk [vmem:[%s577 + $0x40] sm:$0xff] %vm297, %v570
        %581 = vst.msk [vmem:[%s577 + $0x60] sm:$0xff] %vm297, %v572
        %582 = vrot.lane.b32.xlu0 %v553, 64
        %v583 = vpop.permute.xlu0 %582
        %584 = vrot.lane.b32.xlu0 %v554, 64
        %v585 = vpop.permute.xlu0 %584
        %586 = vrot.lane.b32.xlu0 %v555, 64
        %v587 = vpop.permute.xlu0 %586
        %588 = vrot.lane.b32.xlu0 %v556, 64
        %v589 = vpop.permute.xlu0 %588
        %s594 = scalar_lea.vmem %s271, 16 [#allocation8]
        %595 = vst.msk [vmem:[%s594] sm:$0xff] %vm297, %v583
        %596 = vst.msk [vmem:[%s594 + $0x20] sm:$0xff] %vm297, %v585
        %597 = vst.msk [vmem:[%s594 + $0x40] sm:$0xff] %vm297, %v587
        %598 = vst.msk [vmem:[%s594 + $0x60] sm:$0xff] %vm297, %v589
        %599 = vrot.lane.b32.xlu0 %v553, 32
        %v600 = vpop.permute.xlu0 %599
        %601 = vrot.lane.b32.xlu0 %v554, 32
        %v602 = vpop.permute.xlu0 %601
        %603 = vrot.lane.b32.xlu0 %v555, 32
        %v604 = vpop.permute.xlu0 %603
        %605 = vrot.lane.b32.xlu0 %v556, 32
        %v606 = vpop.permute.xlu0 %605
        %s611 = scalar_lea.vmem %s271, 24 [#allocation8]
        %612 = vst.msk [vmem:[%s611] sm:$0xff] %vm297, %v600
        %613 = vst.msk [vmem:[%s611 + $0x20] sm:$0xff] %vm297, %v602
        %614 = vst.msk [vmem:[%s611 + $0x40] sm:$0xff] %vm297, %v604
        %615 = vst.msk [vmem:[%s611 + $0x60] sm:$0xff] %vm297, %v606
        %s616 = sand.u32 %s141, 1
        %s617 = scalar_lea.sflag [#allocation4], %s616
        %s618 = sand.u32 %s141, 1
        %s619 = smul.addr %s618, 128
        %s620 = scalar_lea.vmem [#allocation8], %s619
        // Predicated region
        $region53: #{tpu_custom_call.1} parent=39 // pred_check
          %p621 = pneg %p151
        $region54: #{tpu_custom_call.1} parent=39 // pred_check_branch
          %623 = sbr.rel (%p621) target = $region56
        $region55: #{tpu_custom_call.1} parent=39 // pred_region
          %s624 = smul.u32 4, %s23
          %s626 = ssub.s32 2048, 2048
          %627 = vsyncadd %s617, %s626
          %s628 = smul.addr %s624, 4
          %s629 = smul.addr %s628, 128
          %s630 = scalar_lea.hbm %s5, %s629
          %s631 = sshll.u32 %s620, 4
          %s632 = int_to_ptr.vmem [resolvable:$true] %s631
          %637 = dma.vmem_to_hbm [thread:$0]  %s632, 2048, %s630, %s617, 128, 128, 8
        $region56: #{tpu_custom_call.1} parent=39 // pred_fallthru
          _
      $region40: #{tpu_custom_call.1} parent=5 // pred_fallthru
        _
      %p638 = scmp.le.s32.totalorder 2, %s18
      // Predicated region
      $region57: #{tpu_custom_call.1} parent=5 // pred_check
        %p639 = pneg %p638
      $region58: #{tpu_custom_call.1} parent=5 // pred_check_branch
        %641 = sbr.rel (%p639) target = $region60
      $region59: #{tpu_custom_call.1} parent=5 // pred_region
        %s642 = ssub.s32 %s18, 2
        // Predicated region
        $region61: #{tpu_custom_call.1} parent=59 // pred_check
          %p643 = pneg %p157
        $region62: #{tpu_custom_call.1} parent=59 // pred_check_branch
          %645 = sbr.rel (%p643) target = $region64
        $region63: #{tpu_custom_call.1} parent=59 // pred_region
          %s646 = sand.u32 %s142, 1
          %s647 = scalar_lea.sflag [#allocation4], %s646
          %s648 = sand.u32 %s142, 1
          %s649 = smul.addr %s648, 128
          %s650 = scalar_lea.vmem [#allocation8], %s649
          %651 = dma.done %s647, 2048
        $region64: #{tpu_custom_call.1} parent=59 // pred_fallthru
          _
      $region60: #{tpu_custom_call.1} parent=5 // pred_fallthru
        _
    $region6: #{tpu_custom_call.1} parent=1 // loop_footer
      %s22 = sadd.s32 1, %s18
    $region7: #{tpu_custom_call.1} parent=1 // loop_footer_branch
      %17 = sbr.rel target = $region3
    $region8: #{tpu_custom_call.1} parent=1 // loop_exit
      _
    %652 = vsyncpa [#allocation3], 1
    %s653 = scalar_lea.sflag [#allocation3], 1
    %654 = vsyncpa %s653, 1
    %655 = vsyncpa [#allocation6], 1
    %656 = vsyncpa [#allocation4], 1
    %s657 = scalar_lea.sflag [#allocation4], 1
    %658 = vsyncpa %s657, 1

</llo_original>
